<compile_context>
chip_gen: v6e
topology: v6e:2x2x1
jax: 0.10.0
libtpu: 0.0.40
codegen_flags: <defaults>
</compile_context>

<pallas_src>
import jax
import jax.numpy as jnp
from jax.experimental import pallas as pl
from jax.experimental.pallas import tpu as pltpu

FC2_PAD = 16  # fc2 out-features (15) zero-padded to a clean sublane multiple


def mlp_kernel(x_ref, w1_ref, b1_ref, w2_ref, b2_ref, w3_ref, b3_ref, o_ref):
    # x_ref: (IN, TB) feature-major tile of the transposed input batch.
    xt = x_ref[...]
    # fc1 + ReLU -> (H, TB) on the MXU; bias is a (H, 1) column broadcast.
    h1 = jnp.dot(w1_ref[...], xt, preferred_element_type=jnp.float32)
    h1 = jnp.maximum(h1 + b1_ref[...], 0.0)
    # fc2 + ReLU -> (16, TB) on the MXU (row 15 is zero padding -> stays 0).
    h2 = jnp.dot(w2_ref[...], h1, preferred_element_type=jnp.float32)
    h2 = jnp.maximum(h2 + b2_ref[...], 0.0)
    # fc3 (out_features = 1): VPU multiply + sublane reduce instead of an
    # N=1, K=15 MXU matmul; the (1, TB) result is lane-dense for the store.
    h3 = jnp.sum(h2 * w3_ref[...], axis=0, keepdims=True) + b3_ref[0, 0]
    o_ref[...] = jnp.maximum(h3, 0.0).astype(o_ref.dtype)


def net_forward(x, params, tb=512):
    """x: (B, input_size) f32. Returns (B, 1) f32, matching Net.forward."""
    w1, b1 = params["w1"], params["b1"]          # (H, IN), (H, 1)
    w2, b2 = params["w2"], params["b2"]          # (16, H), (16, 1)  (padded)
    w3, b3 = params["w3"], params["b3"]          # (16, 1), (1, 1)   (padded)
    B, in_size = x.shape
    hidden = w1.shape[0]

    # Batch tile along the lane axis: a multiple of 128, at most `tb`.
    TB = min(tb, pl.cdiv(B, 128) * 128)
    nb = pl.cdiv(B, TB)
    B_pad = nb * TB

    # Feature-major input: (IN, B_pad) with zero-padded batch columns.
    xt = jnp.zeros((in_size, B_pad), x.dtype).at[:, :B].set(x.T)

    grid_spec = pltpu.PrefetchScalarGridSpec(
        num_scalar_prefetch=0,
        grid=(nb,),
        in_specs=[
            pl.BlockSpec((in_size, TB), lambda i: (0, i)),       # x (streamed)
            pl.BlockSpec((hidden, in_size), lambda i: (0, 0)),   # w1 (resident)
            pl.BlockSpec((hidden, 1), lambda i: (0, 0)),         # b1
            pl.BlockSpec((FC2_PAD, hidden), lambda i: (0, 0)),   # w2 (padded)
            pl.BlockSpec((FC2_PAD, 1), lambda i: (0, 0)),        # b2 (padded)
            pl.BlockSpec((FC2_PAD, 1), lambda i: (0, 0)),        # w3 as column
            pl.BlockSpec(memory_space=pltpu.MemorySpace.SMEM),   # b3 scalar
        ],
        out_specs=pl.BlockSpec((1, TB), lambda i: (0, i)),       # lane-dense out
    )
    out_t = pl.pallas_call(
        mlp_kernel,
        out_shape=jax.ShapeDtypeStruct((1, B_pad), jnp.float32),
        grid_spec=grid_spec,
        compiler_params=pltpu.CompilerParams(
            dimension_semantics=("parallel",),   # shard batch tiles across TCs
            vmem_limit_bytes=32 * 1024 * 1024,
        ),
    )(xt, w1, b1, w2, b2, w3, b3)
    # TODO(synk): for v6e/v7x, optionally stream xt / w1 / w2 as bf16 to halve
    # HBM bytes (keep f32 accumulation) if the accuracy budget allows.
    return out_t[0, :B].reshape(B, 1)


def init_params(key, input_size, hidden_size):
    """PyTorch-style uniform init; fc2/fc3 zero-padded 15 -> 16 features."""
    ks = jax.random.split(key, 6)

    def linear(kw, kb, fan_in, fan_out):
        bound = 1.0 / jnp.sqrt(fan_in)
        w = jax.random.uniform(kw, (fan_out, fan_in), jnp.float32, -bound, bound)
        b = jax.random.uniform(kb, (fan_out, 1), jnp.float32, -bound, bound)
        return w, b

    w1, b1 = linear(ks[0], ks[1], input_size, hidden_size)   # (H, IN), (H, 1)
    w2, b2 = linear(ks[2], ks[3], hidden_size, 15)           # (15, H), (15, 1)
    w3, b3 = linear(ks[4], ks[5], 15, 1)                     # (1, 15), (1, 1)

    # Zero-pad fc2 out-features / fc3 in-features; the padded row/column
    # contributes exactly 0 through ReLU and the final reduction.
    w2p = jnp.zeros((FC2_PAD, hidden_size), jnp.float32).at[:15].set(w2)
    b2p = jnp.zeros((FC2_PAD, 1), jnp.float32).at[:15].set(b2)
    w3p = jnp.zeros((FC2_PAD, 1), jnp.float32).at[:15, 0].set(w3[0])
    return {"w1": w1, "b1": b1, "w2": w2p, "b2": b2p, "w3": w3p, "b3": b3}


def reference_forward(x, p):
    h = jnp.maximum(x @ p["w1"].T + p["b1"].T, 0.0)
    h = jnp.maximum(h @ p["w2"].T + p["b2"].T, 0.0)
    return jnp.maximum(h @ p["w3"] + p["b3"], 0.0)


if __name__ == "__main__":
    batch, input_size, hidden_size = 8, 32, 32
    key = jax.random.PRNGKey(0)
    k_x, k_p, k_x2 = jax.random.split(key, 3)
    params = init_params(k_p, input_size, hidden_size)

    # Small single-tile check.
    x = jax.random.normal(k_x, (batch, input_size), dtype=jnp.float32)
    out = jax.block_until_ready(net_forward(x, params))
    ref = reference_forward(x, params)
    assert out.shape == (batch, 1)
    assert jnp.allclose(out, ref, atol=1e-4, rtol=1e-4)

    # Multi-tile grid check (3 batch tiles of 128, padded 300 -> 384).
    x2 = jax.random.normal(k_x2, (300, input_size), dtype=jnp.float32)
    out2 = jax.block_until_ready(net_forward(x2, params, tb=128))
    assert out2.shape == (300, 1)
    assert jnp.allclose(out2, reference_forward(x2, params), atol=1e-4, rtol=1e-4)

    print("KERNEL_OK")
</pallas_src>

<mosaic_0001>
module attributes {stable_mosaic.version = 11 : i64} {
  func.func @mlp_kernel(%arg0: i32, %arg1: memref<32x128xf32, #tpu.memory_space<vmem>>, %arg2: memref<32x32xf32, #tpu.memory_space<vmem>>, %arg3: memref<32x1xf32, #tpu.memory_space<vmem>>, %arg4: memref<16x32xf32, #tpu.memory_space<vmem>>, %arg5: memref<16x1xf32, #tpu.memory_space<vmem>>, %arg6: memref<16x1xf32, #tpu.memory_space<vmem>>, %arg7: memref<1x1xf32, #tpu.memory_space<smem>>, %arg8: memref<1x128xf32, #tpu.memory_space<vmem>>) attributes {dimension_semantics = [#tpu.dimension_semantics<parallel>], iteration_bounds = array<i64: 1>, scalar_prefetch = 0 : i64, scratch_operands = 0 : i64, tpu.core_type = #tpu.core_type<tc>, window_params = [{transform_indices = @transform_0, window_bounds = array<i64: 32, 128>}, {pipeline_mode = #tpu.pipeline_mode<synchronous>, transform_indices = @transform_1, window_bounds = array<i64: 32, 32>}, {pipeline_mode = #tpu.pipeline_mode<synchronous>, transform_indices = @transform_2, window_bounds = array<i64: 32, 1>}, {pipeline_mode = #tpu.pipeline_mode<synchronous>, transform_indices = @transform_3, window_bounds = array<i64: 16, 32>}, {pipeline_mode = #tpu.pipeline_mode<synchronous>, transform_indices = @transform_4, window_bounds = array<i64: 16, 1>}, {pipeline_mode = #tpu.pipeline_mode<synchronous>, transform_indices = @transform_5, window_bounds = array<i64: 16, 1>}, {transform_indices = @transform_6, window_bounds = array<i64: 1, 1>}, {transform_indices = @transform_7, window_bounds = array<i64: 1, 128>}]} {
    %c0 = arith.constant 0 : index
    %c0_0 = arith.constant 0 : index
    %0 = vector.load %arg1[%c0, %c0_0] : memref<32x128xf32, #tpu.memory_space<vmem>>, vector<32x128xf32>
    %c0_1 = arith.constant 0 : index
    %c0_2 = arith.constant 0 : index
    %1 = vector.load %arg2[%c0_1, %c0_2] : memref<32x32xf32, #tpu.memory_space<vmem>>, vector<32x32xf32>
    %cst = arith.constant dense<0.000000e+00> : vector<32x128xf32>
    %2 = tpu.matmul %1, %0, %cst {dimension_numbers = #tpu.dot_dimension_numbers<[1], [0], [0], [1], [0, 0, 1, 1], [], []>} : vector<32x32xf32>, vector<32x128xf32>, vector<32x128xf32> -> vector<32x128xf32>
    %c0_3 = arith.constant 0 : index
    %c0_4 = arith.constant 0 : index
    %3 = vector.load %arg3[%c0_3, %c0_4] : memref<32x1xf32, #tpu.memory_space<vmem>>, vector<32x1xf32>
    %4 = vector.broadcast %3 : vector<32x1xf32> to vector<32x128xf32>
    %5 = arith.addf %2, %4 : vector<32x128xf32>
    %cst_5 = arith.constant 0.000000e+00 : f32
    %6 = vector.broadcast %cst_5 : f32 to vector<32x128xf32>
    %7 = arith.maximumf %5, %6 : vector<32x128xf32>
    %c0_6 = arith.constant 0 : index
    %c0_7 = arith.constant 0 : index
    %8 = vector.load %arg4[%c0_6, %c0_7] : memref<16x32xf32, #tpu.memory_space<vmem>>, vector<16x32xf32>
    %cst_8 = arith.constant dense<0.000000e+00> : vector<16x128xf32>
    %9 = tpu.matmul %8, %7, %cst_8 {dimension_numbers = #tpu.dot_dimension_numbers<[1], [0], [0], [1], [0, 0, 1, 1], [], []>} : vector<16x32xf32>, vector<32x128xf32>, vector<16x128xf32> -> vector<16x128xf32>
    %c0_9 = arith.constant 0 : index
    %c0_10 = arith.constant 0 : index
    %10 = vector.load %arg5[%c0_9, %c0_10] : memref<16x1xf32, #tpu.memory_space<vmem>>, vector<16x1xf32>
    %11 = vector.broadcast %10 : vector<16x1xf32> to vector<16x128xf32>
    %12 = arith.addf %9, %11 : vector<16x128xf32>
    %cst_11 = arith.constant 0.000000e+00 : f32
    %13 = vector.broadcast %cst_11 : f32 to vector<16x128xf32>
    %14 = arith.maximumf %12, %13 : vector<16x128xf32>
    %c0_12 = arith.constant 0 : index
    %c0_13 = arith.constant 0 : index
    %15 = vector.load %arg6[%c0_12, %c0_13] : memref<16x1xf32, #tpu.memory_space<vmem>>, vector<16x1xf32>
    %16 = vector.broadcast %15 : vector<16x1xf32> to vector<16x128xf32>
    %17 = arith.mulf %14, %16 : vector<16x128xf32>
    %cst_14 = arith.constant dense<0.000000e+00> : vector<128xf32>
    %18 = vector.multi_reduction <add>, %17, %cst_14 [0] : vector<16x128xf32> to vector<128xf32>
    %19 = vector.shape_cast %18 : vector<128xf32> to vector<1x128xf32>
    %c0_15 = arith.constant 0 : index
    %c0_16 = arith.constant 0 : index
    %20 = memref.load %arg7[%c0_15, %c0_16] : memref<1x1xf32, #tpu.memory_space<smem>>
    %21 = vector.broadcast %20 : f32 to vector<1x128xf32>
    %22 = arith.addf %19, %21 : vector<1x128xf32>
    %cst_17 = arith.constant 0.000000e+00 : f32
    %23 = vector.broadcast %cst_17 : f32 to vector<1x128xf32>
    %24 = arith.maximumf %22, %23 : vector<1x128xf32>
    %c0_18 = arith.constant 0 : index
    %c0_19 = arith.constant 0 : index
    %25 = vector.load %arg8[%c0_18, %c0_19] : memref<1x128xf32, #tpu.memory_space<vmem>>, vector<1x128xf32>
    tpu.vector_store %arg8[%c0_18, %c0_19], %24 {strides = array<i32>} : memref<1x128xf32, #tpu.memory_space<vmem>>, vector<1x128xf32>,
    return
  }
  func.func @transform_0(%arg0: i32) -> (i32, i32) {
    %c0_i32 = arith.constant 0 : i32
    %c0_i32_0 = arith.constant 0 : i32
    return %c0_i32, %arg0 : i32, i32
  }
  func.func @transform_1(%arg0: i32) -> (i32, i32) {
    %c0_i32 = arith.constant 0 : i32
    %c0_i32_0 = arith.constant 0 : i32
    %c0_i32_1 = arith.constant 0 : i32
    return %c0_i32, %c0_i32_0 : i32, i32
  }
  func.func @transform_2(%arg0: i32) -> (i32, i32) {
    %c0_i32 = arith.constant 0 : i32
    %c0_i32_0 = arith.constant 0 : i32
    %c0_i32_1 = arith.constant 0 : i32
    return %c0_i32, %c0_i32_0 : i32, i32
  }
  func.func @transform_3(%arg0: i32) -> (i32, i32) {
    %c0_i32 = arith.constant 0 : i32
    %c0_i32_0 = arith.constant 0 : i32
    %c0_i32_1 = arith.constant 0 : i32
    return %c0_i32, %c0_i32_0 : i32, i32
  }
  func.func @transform_4(%arg0: i32) -> (i32, i32) {
    %c0_i32 = arith.constant 0 : i32
    %c0_i32_0 = arith.constant 0 : i32
    %c0_i32_1 = arith.constant 0 : i32
    return %c0_i32, %c0_i32_0 : i32, i32
  }
  func.func @transform_5(%arg0: i32) -> (i32, i32) {
    %c0_i32 = arith.constant 0 : i32
    %c0_i32_0 = arith.constant 0 : i32
    %c0_i32_1 = arith.constant 0 : i32
    return %c0_i32, %c0_i32_0 : i32, i32
  }
  func.func @transform_6(%arg0: i32) -> (i32, i32) {
    %c0_i32 = arith.constant 0 : i32
    %c0_i32_0 = arith.constant 0 : i32
    %c0_i32_1 = arith.constant 0 : i32
    return %c0_i32, %c0_i32_0 : i32, i32
  }
  func.func @transform_7(%arg0: i32) -> (i32, i32) {
    %c0_i32 = arith.constant 0 : i32
    %c0_i32_0 = arith.constant 0 : i32
    return %c0_i32, %arg0 : i32, i32
  }
}

</mosaic_0001>

<llo_original>
// kernel: tpu_custom_call.1
$region0: #{tpu_custom_call.1}
  #allocation0 [shape = 'u32[]', space=smem, size = 0x4, offset = 0x4, fixed_abs, tag = 'smem constant byte address 0x4 - core index']
  #allocation1 [shape = 'u32[144,128]{1,0:T(1,128)}', space=vmem, size = 0x12000, scoped, tag = 'internal scratch']
  #allocation2 [shape = 'f32[1,1]{1,0:T(1,128)S(6)}', space=smem, size = 0x200, scoped, tag = 'scoped memory for tpu_custom_call.1']
  %s0 = inlined_call_operand.vmem [shape: f32[32,128], index: 0, kind: input, shape index: {}]
  %s1 = inlined_call_operand.vmem [shape: f32[32,32], index: 1, kind: input, shape index: {}]
  %s2 = inlined_call_operand.vmem [shape: f32[32,1], index: 2, kind: input, shape index: {}]
  %s3 = inlined_call_operand.hbm [shape: f32[16,32], index: 3, kind: input, shape index: {}]
  %s4 = inlined_call_operand.vmem [shape: f32[16,1], index: 4, kind: input, shape index: {}]
  %s5 = inlined_call_operand.vmem [shape: f32[16,1], index: 5, kind: input, shape index: {}]
  %s6 = inlined_call_operand.<no memory space> [shape: f32[1,1], index: 6, kind: input, shape index: {}]
  %s7 = inlined_call_operand.hbm [shape: f32[1,128], index: 7, kind: output, shape index: {}]
  %s8 = sld [smem:[#allocation0]]
  $region42: #{tpu_custom_call.1} parent=0
    _
  %s10 = ssub.s32 1, %s8
  %s11 = scalar_select 0, %s10, %s8
  %12 = sst [smem:[#allocation2]] %s6
  $region1: #{tpu_custom_call.1} parent=0
    #allocation3 [shape = 'u8[8192]{0}', space=vmem, size = 0x2000, scoped, tag = 'input window, operand 3, single buffered']
    #allocation4 [shape = 's32[1]{0}', space=sflag, size = 0x4, scoped, tag = 'scoped memory for tpu_custom_call.1']
    #allocation5 [shape = 's32[1]{0}', space=sflag, size = 0x4, scoped, tag = 'scoped memory for tpu_custom_call.1']
    #allocation6 [shape = 'u8[512]{0}', space=vmem, size = 0x400, scoped, tag = 'output window, operand 0, single buffered']
    %13 = vsyncpa [#allocation4], 0
    %14 = vsyncpa [#allocation5], 0
    // Predicated region
    $region2: #{tpu_custom_call.1} parent=1 // pred_check
      _
    $region3: #{tpu_custom_call.1} parent=1 // pred_check_branch
      %16 = sbr.rel (0) target = $region5
    $region4: #{tpu_custom_call.1} parent=1 // pred_region
      _
    $region5: #{tpu_custom_call.1} parent=1 // pred_fallthru
      _
    // Predicated region
    $region6: #{tpu_custom_call.1} parent=1 // pred_check
      _
    $region7: #{tpu_custom_call.1} parent=1 // pred_check_branch
      %18 = sbr.rel (0) target = $region9
    $region8: #{tpu_custom_call.1} parent=1 // pred_region
      _
    $region9: #{tpu_custom_call.1} parent=1 // pred_fallthru
      _
    // Predicated region
    $region10: #{tpu_custom_call.1} parent=1 // pred_check
      _
    $region11: #{tpu_custom_call.1} parent=1 // pred_check_branch
      %20 = sbr.rel (0) target = $region13
    $region12: #{tpu_custom_call.1} parent=1 // pred_region
      _
    $region13: #{tpu_custom_call.1} parent=1 // pred_fallthru
      _
    // Predicated region
    $region14: #{tpu_custom_call.1} parent=1 // pred_check
      _
    $region15: #{tpu_custom_call.1} parent=1 // pred_check_branch
      %22 = sbr.rel (0) target = $region17
    $region16: #{tpu_custom_call.1} parent=1 // pred_region
      %s24 = ssub.s32 256, 256
      %25 = vsyncadd [#allocation4], %s24
      %s26 = sshll.u32 [#allocation3], 4
      %s27 = int_to_ptr.vmem [resolvable:$true] %s26
      %32 = dma.hbm_to_vmem [thread:$0]  %s3, 256, %s27, [#allocation4], 128, 128, 8
    $region17: #{tpu_custom_call.1} parent=1 // pred_fallthru
      _
    // Predicated region
    $region18: #{tpu_custom_call.1} parent=1 // pred_check
      _
    $region19: #{tpu_custom_call.1} parent=1 // pred_check_branch
      %34 = sbr.rel (0) target = $region21
    $region20: #{tpu_custom_call.1} parent=1 // pred_region
      _
    $region21: #{tpu_custom_call.1} parent=1 // pred_fallthru
      _
    // Predicated region
    $region22: #{tpu_custom_call.1} parent=1 // pred_check
      _
    $region23: #{tpu_custom_call.1} parent=1 // pred_check_branch
      %36 = sbr.rel (0) target = $region25
    $region24: #{tpu_custom_call.1} parent=1 // pred_region
      _
    $region25: #{tpu_custom_call.1} parent=1 // pred_fallthru
      _
    // Predicated region
    $region26: #{tpu_custom_call.1} parent=1 // pred_check
      _
    $region27: #{tpu_custom_call.1} parent=1 // pred_check_branch
      %38 = sbr.rel (0) target = $region29
    $region28: #{tpu_custom_call.1} parent=1 // pred_region
      _
    $region29: #{tpu_custom_call.1} parent=1 // pred_fallthru
      _
    // Predicated region
    $region30: #{tpu_custom_call.1} parent=1 // pred_check
      _
    $region31: #{tpu_custom_call.1} parent=1 // pred_check_branch
      %40 = sbr.rel (0) target = $region33
    $region32: #{tpu_custom_call.1} parent=1 // pred_region
      %41 = dma.done [#allocation4], 256
    $region33: #{tpu_custom_call.1} parent=1 // pred_fallthru
      _
    %v42 = vld [vmem:[%s0] sm:$0xff]
    %v43 = vld [vmem:[%s0 + $0x8] sm:$0xff]
    %v44 = vld [vmem:[%s0 + $0x10] sm:$0xff]
    %v45 = vld [vmem:[%s0 + $0x18] sm:$0xff]
    %v46 = vld [vmem:[%s1] sm:$0xff]
    %v47 = vld [vmem:[%s1 + $0x8] sm:$0xff]
    %v48 = vld [vmem:[%s1 + $0x10] sm:$0xff]
    %v49 = vld [vmem:[%s1 + $0x18] sm:$0xff]
    %v50 = vld [vmem:[%s2] sm:$0xff]
    %v51 = vld [vmem:[%s2 + $0x8] sm:$0xff]
    %v52 = vld [vmem:[%s2 + $0x10] sm:$0xff]
    %v53 = vld [vmem:[%s2 + $0x18] sm:$0xff]
    %55 = vset.pattern.permute.xlu0 0
    %56 = vperm.xlu0 %55, %v50
    %v57 = vpop.permute.xlu0 %56
    %60 = vset.pattern.permute.xlu0 0
    %61 = vperm.xlu0 %60, %v51
    %v62 = vpop.permute.xlu0 %61
    %65 = vset.pattern.permute.xlu0 0
    %66 = vperm.xlu0 %65, %v52
    %v67 = vpop.permute.xlu0 %66
    %70 = vset.pattern.permute.xlu0 0
    %71 = vperm.xlu0 %70, %v53
    %v72 = vpop.permute.xlu0 %71
    %vm74 = vcmask 261120
    %v76 = vsel %vm74, %v46, 0
    %v79 = vsel %vm74, %v47, 0
    %v82 = vsel %vm74, %v48, 0
    %v85 = vsel %vm74, %v49, 0
    %87 = vmatprep.subr.mxu0 0.0
    %88 = vmatpush1.msra.mxu0 0.0
    %89 = vmatprep.subr.mxu0 0.0
    %90 = vmatpush1.msra.mxu0 0.0
    %91 = vmatprep.subr.mxu0 0.0
    %92 = vmatpush1.msra.mxu0 0.0
    %93 = vmatprep.subr.mxu0 0.0
    %94 = vmatpush1.msra.mxu0 0.0
    %95 = vmatprep.subr.mxu0 0.0
    %96 = vmatpush1.msra.mxu0 0.0
    %97 = vmatprep.subr.mxu0 0.0
    %98 = vmatpush1.msra.mxu0 0.0
    %99 = vmatprep.subr.mxu0 0.0
    %100 = vmatpush1.msra.mxu0 0.0
    %101 = vmatprep.subr.mxu0 0.0
    %102 = vmatpush1.msra.mxu0 0.0
    %103 = vmatprep.subr.mxu0 0.0
    %104 = vmatpush1.msra.mxu0 0.0
    %105 = vmatprep.subr.mxu0 0.0
    %106 = vmatpush1.msra.mxu0 0.0
    %107 = vmatprep.subr.mxu0 0.0
    %108 = vmatpush1.msra.mxu0 0.0
    %109 = vmatprep.subr.mxu0 0.0
    %110 = vmatpush1.msra.mxu0 0.0
    %111 = vmatprep.subr.mxu0 0.0
    %112 = vmatpush1.msra.mxu0 %v45
    %113 = vmatprep.subr.mxu0 0.0
    %114 = vmatpush1.msra.mxu0 %v44
    %115 = vmatprep.subr.mxu0 0.0
    %116 = vmatpush1.msra.mxu0 %v43
    %117 = vmatprep.subr.mxu0 0.0
    %118 = vmatpush1.msra.mxu0 %v42
    %119 = vmatprep.subr.mxu0 0.0
    %120 = vmatpush2.msra.mxu0 0.0
    %121 = vmatprep.subr.mxu0 0.0
    %122 = vmatpush2.msra.mxu0 0.0
    %123 = vmatprep.subr.mxu0 0.0
    %124 = vmatpush2.msra.mxu0 0.0
    %125 = vmatprep.subr.mxu0 0.0
    %126 = vmatpush2.msra.mxu0 0.0
    %127 = vmatprep.subr.mxu0 0.0
    %128 = vmatpush2.msra.mxu0 0.0
    %129 = vmatprep.subr.mxu0 0.0
    %130 = vmatpush2.msra.mxu0 0.0
    %131 = vmatprep.subr.mxu0 0.0
    %132 = vmatpush2.msra.mxu0 0.0
    %133 = vmatprep.subr.mxu0 0.0
    %134 = vmatpush2.msra.mxu0 0.0
    %135 = vmatprep.subr.mxu0 0.0
    %136 = vmatpush2.msra.mxu0 0.0
    %137 = vmatprep.subr.mxu0 0.0
    %138 = vmatpush2.msra.mxu0 0.0
    %139 = vmatprep.subr.mxu0 0.0
    %140 = vmatpush2.msra.mxu0 0.0
    %141 = vmatprep.subr.mxu0 0.0
    %142 = vmatpush2.msra.mxu0 0.0
    %143 = vmatprep.subr.mxu0 0.0
    %144 = vmatpush2.msra.mxu0 0.0
    %145 = vmatprep.subr.mxu0 0.0
    %146 = vmatpush2.msra.mxu0 0.0
    %147 = vmatprep.subr.mxu0 0.0
    %148 = vmatpush2.msra.mxu0 0.0
    %149 = vmatprep.subr.mxu0 0.0
    %150 = vmatpush2.msra.mxu0 0.0
    %151 = vmatprep.mubr.f32.mxu0 0.0
    %152 = vmatmul.mubr.f32.gmra.mxu0 %v76
    %v153 = vpop.f32.mrf.mxu0
    %v154 = vadd.f32 %v57, %v153
    %v155 = vpop.f32.mrf.mxu0
    %156 = vmatprep.mubr.f32.mxu0 0.0
    %157 = vmatmul.mubr.f32.gmra.mxu0 %v79
    %v158 = vpop.f32.mrf.mxu0
    %v159 = vadd.f32 %v62, %v158
    %v160 = vpop.f32.mrf.mxu0
    %161 = vmatprep.mubr.f32.mxu0 0.0
    %162 = vmatmul.mubr.f32.gmra.mxu0 %v82
    %v163 = vpop.f32.mrf.mxu0
    %v164 = vadd.f32 %v67, %v163
    %v165 = vpop.f32.mrf.mxu0
    %166 = vmatprep.mubr.f32.mxu0 0.0
    %167 = vmatmul.mubr.f32.gmra.mxu0 %v85
    %v168 = vpop.f32.mrf.mxu0
    %v169 = vadd.f32 %v72, %v168
    %v170 = vpop.f32.mrf.mxu0
    %171 = vdwg.mxu0
    %v172 = vmax.f32 %v154, 0.0
    %v173 = vmax.f32 %v159, 0.0
    %v174 = vmax.f32 %v164, 0.0
    %v175 = vmax.f32 %v169, 0.0
    %v176 = vld [vmem:[#allocation3] sm:$0xff]
    %v177 = vld [vmem:[#allocation3 + $0x8] sm:$0xff]
    %v178 = vld [vmem:[%s4] sm:$0xff]
    %v179 = vld [vmem:[%s4 + $0x8] sm:$0xff]
    %181 = vset.pattern.permute.xlu0 0
    %182 = vperm.xlu0 %181, %v178
    %v183 = vpop.permute.xlu0 %182
    %186 = vset.pattern.permute.xlu0 0
    %187 = vperm.xlu0 %186, %v179
    %v188 = vpop.permute.xlu0 %187
    %v191 = vsel %vm74, %v176, 0
    %v194 = vsel %vm74, %v177, 0
    %196 = vmatprep.subr.mxu0 0.0
    %197 = vmatpush1.msra.mxu0 0.0
    %198 = vmatprep.subr.mxu0 0.0
    %199 = vmatpush1.msra.mxu0 0.0
    %200 = vmatprep.subr.mxu0 0.0
    %201 = vmatpush1.msra.mxu0 0.0
    %202 = vmatprep.subr.mxu0 0.0
    %203 = vmatpush1.msra.mxu0 0.0
    %204 = vmatprep.subr.mxu0 0.0
    %205 = vmatpush1.msra.mxu0 0.0
    %206 = vmatprep.subr.mxu0 0.0
    %207 = vmatpush1.msra.mxu0 0.0
    %208 = vmatprep.subr.mxu0 0.0
    %209 = vmatpush1.msra.mxu0 0.0
    %210 = vmatprep.subr.mxu0 0.0
    %211 = vmatpush1.msra.mxu0 0.0
    %212 = vmatprep.subr.mxu0 0.0
    %213 = vmatpush1.msra.mxu0 0.0
    %214 = vmatprep.subr.mxu0 0.0
    %215 = vmatpush1.msra.mxu0 0.0
    %216 = vmatprep.subr.mxu0 0.0
    %217 = vmatpush1.msra.mxu0 0.0
    %218 = vmatprep.subr.mxu0 0.0
    %219 = vmatpush1.msra.mxu0 0.0
    %220 = vmatprep.subr.mxu0 0.0
    %221 = vmatpush1.msra.mxu0 %v175
    %222 = vmatprep.subr.mxu0 0.0
    %223 = vmatpush1.msra.mxu0 %v174
    %224 = vmatprep.subr.mxu0 0.0
    %225 = vmatpush1.msra.mxu0 %v173
    %226 = vmatprep.subr.mxu0 0.0
    %227 = vmatpush1.msra.mxu0 %v172
    %228 = vmatprep.subr.mxu0 0.0
    %229 = vmatpush2.msra.mxu0 0.0
    %230 = vmatprep.subr.mxu0 0.0
    %231 = vmatpush2.msra.mxu0 0.0
    %232 = vmatprep.subr.mxu0 0.0
    %233 = vmatpush2.msra.mxu0 0.0
    %234 = vmatprep.subr.mxu0 0.0
    %235 = vmatpush2.msra.mxu0 0.0
    %236 = vmatprep.subr.mxu0 0.0
    %237 = vmatpush2.msra.mxu0 0.0
    %238 = vmatprep.subr.mxu0 0.0
    %239 = vmatpush2.msra.mxu0 0.0
    %240 = vmatprep.subr.mxu0 0.0
    %241 = vmatpush2.msra.mxu0 0.0
    %242 = vmatprep.subr.mxu0 0.0
    %243 = vmatpush2.msra.mxu0 0.0
    %244 = vmatprep.subr.mxu0 0.0
    %245 = vmatpush2.msra.mxu0 0.0
    %246 = vmatprep.subr.mxu0 0.0
    %247 = vmatpush2.msra.mxu0 0.0
    %248 = vmatprep.subr.mxu0 0.0
    %249 = vmatpush2.msra.mxu0 0.0
    %250 = vmatprep.subr.mxu0 0.0
    %251 = vmatpush2.msra.mxu0 0.0
    %252 = vmatprep.subr.mxu0 0.0
    %253 = vmatpush2.msra.mxu0 0.0
    %254 = vmatprep.subr.mxu0 0.0
    %255 = vmatpush2.msra.mxu0 0.0
    %256 = vmatprep.subr.mxu0 0.0
    %257 = vmatpush2.msra.mxu0 0.0
    %258 = vmatprep.subr.mxu0 0.0
    %259 = vmatpush2.msra.mxu0 0.0
    %260 = vmatprep.mubr.f32.mxu0 0.0
    %261 = vmatmul.mubr.f32.gmra.mxu0 %v191
    %v262 = vpop.f32.mrf.mxu0
    %v263 = vadd.f32 %v183, %v262
    %v264 = vpop.f32.mrf.mxu0
    %265 = vmatprep.mubr.f32.mxu0 0.0
    %266 = vmatmul.mubr.f32.gmra.mxu0 %v194
    %v267 = vpop.f32.mrf.mxu0
    %v268 = vadd.f32 %v188, %v267
    %v269 = vpop.f32.mrf.mxu0
    %270 = vdwg.mxu0
    %v271 = vmax.f32 %v263, 0.0
    %v272 = vmax.f32 %v268, 0.0
    %v273 = vld [vmem:[%s5] sm:$0xff]
    %v274 = vld [vmem:[%s5 + $0x8] sm:$0xff]
    %276 = vset.pattern.permute.xlu0 0
    %277 = vperm.xlu0 %276, %v273
    %v278 = vpop.permute.xlu0 %277
    %281 = vset.pattern.permute.xlu0 0
    %282 = vperm.xlu0 %281, %v274
    %v283 = vpop.permute.xlu0 %282
    %v285 = vmul.f32 %v271, %v278
    %v286 = vmul.f32 %v272, %v283
    %v287 = vadd.f32 %v285, %v286
    %v288 = vrot.slane %v287, 4
    %v289 = vadd.f32 %v287, %v288
    %v290 = vrot.slane %v289, 2
    %v291 = vadd.f32 %v289, %v290
    %v292 = vrot.slane %v291, 1
    %v293 = vadd.f32 %v291, %v292
    %s294 = sld [smem:[#allocation2]]
    %v295 = vstv %s294
    %v296 = vadd.f32 %v293, %v295
    %v297 = vmax.f32 %v296, 0.0
    %298 = vst [vmem:[#allocation6] sm:$0x1] %v297
    // Predicated region
    $region34: #{tpu_custom_call.1} parent=1 // pred_check
      _
    $region35: #{tpu_custom_call.1} parent=1 // pred_check_branch
      %300 = sbr.rel (0) target = $region37
    $region36: #{tpu_custom_call.1} parent=1 // pred_region
      %s302 = ssub.s32 16, 16
      %303 = vsyncadd [#allocation5], %s302
      %s305 = sshll.u32 [#allocation6], 4
      %s306 = int_to_ptr.vmem [resolvable:$true] %s305
      %308 = dma.vmem_to_hbm [thread:$0]  %s306, 16, %s7, [#allocation5]
    $region37: #{tpu_custom_call.1} parent=1 // pred_fallthru
      _
    // Predicated region
    $region38: #{tpu_custom_call.1} parent=1 // pred_check
      _
    $region39: #{tpu_custom_call.1} parent=1 // pred_check_branch
      %310 = sbr.rel (0) target = $region41
    $region40: #{tpu_custom_call.1} parent=1 // pred_region
      %311 = dma.done [#allocation5], 16
    $region41: #{tpu_custom_call.1} parent=1 // pred_fallthru
      _
    %312 = vsyncpa [#allocation4], 1
    %313 = vsyncpa [#allocation5], 1

</llo_original>
